<compile_context>
chip_gen: v5e
topology: v5e:2x2
jax: 0.10.0
libtpu: 0.0.40
codegen_flags: <defaults>
</compile_context>

<pallas_src>
import math

import jax
import jax.numpy as jnp
from jax.experimental import pallas as pl
from jax.experimental.pallas import tpu as pltpu


def _round_up(x, m):
    return ((x + m - 1) // m) * m


def _gelu_new(x):
    # PyTorch NewGELUActivation / ACT2FN["gelu_new"]:
    # 0.5 * x * (1 + tanh(sqrt(2/pi) * (x + 0.044715 * x^3)))
    c = math.sqrt(2.0 / math.pi)
    return 0.5 * x * (1.0 + jnp.tanh(c * (x + 0.044715 * x * x * x)))


def _vmem_capacity_bytes():
    """Physical VMEM of the current TPU generation (fallback: 64 MiB == v7x)."""
    try:
        info = pltpu.get_tpu_info()
        cap = getattr(info, "vmem_capacity_bytes", None)
        if cap:
            return int(cap)
    except Exception:
        pass
    return 64 * 1024 * 1024


def _vmem_estimate(TM, TI, Hp, x_itemsize, w_itemsize):
    """Rough VMEM footprint for one grid step (double-buffered tiles + scratch)."""
    per_step = ((TM * Hp + TM * Hp) * x_itemsize              # x tile + out tile
                + (Hp * TI + TI + TI * Hp + Hp) * w_itemsize)  # w1, b1, w2, b2 tiles
    acc = TM * Hp * 4                                          # resident f32 accumulator
    h_tmp = TM * TI * (4 + w_itemsize)                         # f32 h + cast for fc2 MXU
    return 2 * per_step + acc + h_tmp


def mlp_kernel(x_ref, w1_ref, b1_ref, w2_ref, b2_ref, o_ref, acc_ref):
    # Grid: (token_tile i, intermediate_tile k) -- k is the fc2 reduction axis.
    # x_ref:  [TM, Hp]            (token tile, full padded hidden)
    # w1_ref: [Hp, TI]  b1_ref: [1, TI]   (column tile of fc1)
    # w2_ref: [TI, Hp]  b2_ref: [1, Hp]   (row tile of fc2)
    # o_ref:  [TM, Hp]  acc_ref: [TM, Hp] f32 accumulator (resident across k)
    k = pl.program_id(1)

    @pl.when(k == 0)
    def _():
        acc_ref[...] = jnp.zeros_like(acc_ref)

    # fc1 column tile: full-H contraction on the MXU, f32 accumulation.
    h = jnp.dot(x_ref[...], w1_ref[...], preferred_element_type=jnp.float32)
    h = h + b1_ref[...].astype(jnp.float32)       # broadcast [1, TI] over rows
    h = _gelu_new(h)                              # f32 GELU (EUP tanh is free filler)

    # fc2 partial: accumulate this I-tile's contribution in f32.
    acc_ref[...] += jnp.dot(h.astype(w2_ref.dtype), w2_ref[...],
                            preferred_element_type=jnp.float32)

    @pl.when(k == pl.num_programs(1) - 1)
    def _():
        # b2 added exactly once per output tile, on the final reduction step.
        o_ref[...] = (acc_ref[...] +
                      b2_ref[...].astype(jnp.float32)).astype(o_ref.dtype)


def prepare_params(w1, b1, w2, b2, *, ti=512):
    """Pad weights/biases ONCE (hoisted out of the per-call hot path).

    ti: intermediate tile (fc1 out / fc2 contraction). 512 fills the 2x256 MXU;
        pass ti=256 on v7x if VMEM gets tight at large hidden sizes (shrinking
        TI does not change flops/byte; shrinking TM would).
    """
    H, I = w1.shape
    TI = min(ti, _round_up(I, 128))
    Hp = _round_up(H, 128)
    Ip = _round_up(I, TI)
    return dict(
        w1=jnp.pad(w1, ((0, Hp - H), (0, Ip - I))),
        b1=jnp.pad(b1.reshape(1, I), ((0, 0), (0, Ip - I))),
        w2=jnp.pad(w2, ((0, Ip - I), (0, Hp - H))),
        b2=jnp.pad(b2.reshape(1, H), ((0, 0), (0, Hp - H))),
        H=H, I=I, Hp=Hp, Ip=Ip, TI=TI,
    )


def mlp_pallas(x, params, *, tm=None):
    """x: [batch, seq, hidden] -> [batch, seq, hidden].

    tm: token tile (rows). If None, starts at 1024 (the arithmetic-intensity
        lever: flops/byte ~ TM for bf16) and is halved until the tile set fits
        the generation's VMEM budget (never below 256).
    """
    B, S, H = x.shape
    assert H == params["H"]
    Hp, Ip, TI = params["Hp"], params["Ip"], params["TI"]
    w1p, b1p, w2p, b2p = params["w1"], params["b1"], params["w2"], params["b2"]

    T = B * S
    dtype = x.dtype
    x_isz = jnp.dtype(dtype).itemsize
    w_isz = jnp.dtype(w1p.dtype).itemsize

    # Generation-aware VMEM budget: ~85% of physical capacity
    # (~54 MiB on v7x, ~108 MiB on v5e/v6e) leaves headroom for compiler scratch.
    budget = int(0.85 * _vmem_capacity_bytes())

    # Token tile selection: as large as the VMEM budget allows.
    Tmax = _round_up(T, 8)
    TM = min(1024 if tm is None else tm, Tmax)
    TM = max(_round_up(TM, 8), 8)
    while TM > 256 and _vmem_estimate(TM, TI, Hp, x_isz, w_isz) > budget:
        TM //= 2
        TM = max(_round_up(TM, 8), 8)
    Tp = _round_up(T, TM)

    # Only the activations are padded per call.
    x2d = jnp.pad(x.reshape(T, H), ((0, Tp - T), (0, Hp - H)))

    nt = Tp // TM
    nk = Ip // TI

    vmem_est = _vmem_estimate(TM, TI, Hp, x_isz, w_isz)
    vmem_limit = min(max(int(1.2 * vmem_est), 32 * 1024 * 1024), budget)

    # Weight tiles are re-streamed once per token tile (nt times) -> count them nt x.
    cost = pl.CostEstimate(
        flops=4 * Tp * Hp * Ip,                 # two matmuls: 2*T*H*I each (padded)
        transcendentals=Tp * Ip,                # one tanh per intermediate element
        bytes_accessed=int(
            nt * (w1p.size + w2p.size + b1p.size + b2p.size) * w_isz
            + (x2d.size + Tp * Hp) * x_isz),
    )

    out2d = pl.pallas_call(
        mlp_kernel,
        out_shape=jax.ShapeDtypeStruct((Tp, Hp), dtype),
        grid_spec=pltpu.PrefetchScalarGridSpec(
            num_scalar_prefetch=0,
            grid=(nt, nk),
            in_specs=[
                pl.BlockSpec((TM, Hp), lambda i, k: (i, 0)),  # x token tile
                pl.BlockSpec((Hp, TI), lambda i, k: (0, k)),  # w1 column tile
                pl.BlockSpec((1, TI), lambda i, k: (0, k)),   # b1 tile
                pl.BlockSpec((TI, Hp), lambda i, k: (k, 0)),  # w2 row tile
                pl.BlockSpec((1, Hp), lambda i, k: (0, 0)),   # b2 (resident)
            ],
            out_specs=pl.BlockSpec((TM, Hp), lambda i, k: (i, 0)),
            scratch_shapes=[pltpu.VMEM((TM, Hp), jnp.float32)],
        ),
        compiler_params=pltpu.CompilerParams(
            dimension_semantics=("parallel", "arbitrary"),
            vmem_limit_bytes=vmem_limit,
        ),
        cost_estimate=cost,
    )(x2d, w1p, b1p, w2p, b2p)

    return out2d[:T, :H].reshape(B, S, H)


def init_params(key, hidden_size, intermediate_size, dtype=jnp.float32):
    """Deterministic nn.Linear-style init: U(-1/sqrt(fan_in), 1/sqrt(fan_in))."""
    k1, k2, k3, k4 = jax.random.split(key, 4)
    bound1 = 1.0 / math.sqrt(hidden_size)
    bound2 = 1.0 / math.sqrt(intermediate_size)
    # Stored as [in, out] so the kernel does x @ W (equivalent to torch x @ W.T).
    w1 = jax.random.uniform(k1, (hidden_size, intermediate_size), dtype,
                            minval=-bound1, maxval=bound1)
    b1 = jax.random.uniform(k2, (intermediate_size,), dtype,
                            minval=-bound1, maxval=bound1)
    w2 = jax.random.uniform(k3, (intermediate_size, hidden_size), dtype,
                            minval=-bound2, maxval=bound2)
    b2 = jax.random.uniform(k4, (hidden_size,), dtype,
                            minval=-bound2, maxval=bound2)
    return w1, b1, w2, b2


def mlp_reference(x, w1, b1, w2, b2):
    h = x @ w1 + b1
    h = _gelu_new(h)
    return h @ w2 + b2


if __name__ == "__main__":
    # config: hidden_size=32, intermediate_size=128, hidden_act="gelu_new"
    batch, seq, hidden, intermediate = 2, 8, 32, 128

    key = jax.random.PRNGKey(0)
    kx, kp = jax.random.split(key)
    x = jax.random.normal(kx, (batch, seq, hidden), dtype=jnp.float32)
    w1, b1, w2, b2 = init_params(kp, hidden, intermediate)

    params = prepare_params(w1, b1, w2, b2)   # pad weights once, outside hot path
    out = mlp_pallas(x, params)
    out = jax.block_until_ready(out)

    ref = mlp_reference(x, w1, b1, w2, b2)
    assert out.shape == (batch, seq, hidden)
    assert jnp.allclose(out, ref, atol=2e-5, rtol=2e-5), "mismatch vs reference"

    print("KERNEL_OK")
</pallas_src>

<mosaic_0001>
module attributes {stable_mosaic.version = 11 : i64} {
  func.func @mlp_kernel(%arg0: i32, %arg1: i32, %arg2: memref<16x128xf32, #tpu.memory_space<vmem>>, %arg3: memref<128x128xf32, #tpu.memory_space<vmem>>, %arg4: memref<1x128xf32, #tpu.memory_space<vmem>>, %arg5: memref<128x128xf32, #tpu.memory_space<vmem>>, %arg6: memref<1x128xf32, #tpu.memory_space<vmem>>, %arg7: memref<16x128xf32, #tpu.memory_space<vmem>>, %arg8: memref<16x128xf32, #tpu.memory_space<vmem>>) attributes {dimension_semantics = [#tpu.dimension_semantics<parallel>, #tpu.dimension_semantics<arbitrary>], iteration_bounds = array<i64: 1, 1>, scalar_prefetch = 0 : i64, scratch_operands = 1 : i64, tpu.core_type = #tpu.core_type<tc>, window_params = [{transform_indices = @transform_0, window_bounds = array<i64: 16, 128>}, {transform_indices = @transform_1, window_bounds = array<i64: 128, 128>}, {transform_indices = @transform_2, window_bounds = array<i64: 1, 128>}, {transform_indices = @transform_3, window_bounds = array<i64: 128, 128>}, {pipeline_mode = #tpu.pipeline_mode<synchronous>, transform_indices = @transform_4, window_bounds = array<i64: 1, 128>}, {transform_indices = @transform_5, window_bounds = array<i64: 16, 128>}]} {
    %c0_i32 = arith.constant 0 : i32
    %0 = arith.cmpi eq, %arg1, %c0_i32 : i32
    %1 = arith.extui %0 : i1 to i32
    %c0_i32_0 = arith.constant 0 : i32
    %2 = arith.cmpi ne, %1, %c0_i32_0 : i32
    scf.if %2 {
      %cst_19 = arith.constant 0.000000e+00 : f32
      %30 = vector.broadcast %cst_19 : f32 to vector<16x128xf32>
      %c0_20 = arith.constant 0 : index
      %c0_21 = arith.constant 0 : index
      %31 = vector.load %arg8[%c0_20, %c0_21] : memref<16x128xf32, #tpu.memory_space<vmem>>, vector<16x128xf32>
      tpu.vector_store %arg8[%c0_20, %c0_21], %30 {strides = array<i32>} : memref<16x128xf32, #tpu.memory_space<vmem>>, vector<16x128xf32>,
    } else {
    }
    %c0 = arith.constant 0 : index
    %c0_1 = arith.constant 0 : index
    %3 = vector.load %arg2[%c0, %c0_1] : memref<16x128xf32, #tpu.memory_space<vmem>>, vector<16x128xf32>
    %c0_2 = arith.constant 0 : index
    %c0_3 = arith.constant 0 : index
    %4 = vector.load %arg3[%c0_2, %c0_3] : memref<128x128xf32, #tpu.memory_space<vmem>>, vector<128x128xf32>
    %cst = arith.constant dense<0.000000e+00> : vector<16x128xf32>
    %5 = tpu.matmul %3, %4, %cst {dimension_numbers = #tpu.dot_dimension_numbers<[1], [0], [0], [1], [0, 0, 1, 1], [], []>} : vector<16x128xf32>, vector<128x128xf32>, vector<16x128xf32> -> vector<16x128xf32>
    %c0_4 = arith.constant 0 : index
    %c0_5 = arith.constant 0 : index
    %6 = vector.load %arg4[%c0_4, %c0_5] : memref<1x128xf32, #tpu.memory_space<vmem>>, vector<1x128xf32>
    %7 = vector.broadcast %6 : vector<1x128xf32> to vector<16x128xf32>
    %8 = arith.addf %5, %7 : vector<16x128xf32>
    %cst_6 = arith.constant 5.000000e-01 : f32
    %9 = vector.broadcast %cst_6 : f32 to vector<16x128xf32>
    %10 = arith.mulf %9, %8 : vector<16x128xf32>
    %cst_7 = arith.constant 4.471500e-02 : f32
    %11 = vector.broadcast %cst_7 : f32 to vector<16x128xf32>
    %12 = arith.mulf %11, %8 : vector<16x128xf32>
    %13 = arith.mulf %12, %8 : vector<16x128xf32>
    %14 = arith.mulf %13, %8 : vector<16x128xf32>
    %15 = arith.addf %8, %14 : vector<16x128xf32>
    %cst_8 = arith.constant 0.797884583 : f32
    %16 = vector.broadcast %cst_8 : f32 to vector<16x128xf32>
    %17 = arith.mulf %16, %15 : vector<16x128xf32>
    %18 = math.tanh %17 : vector<16x128xf32>
    %cst_9 = arith.constant 1.000000e+00 : f32
    %19 = vector.broadcast %cst_9 : f32 to vector<16x128xf32>
    %20 = arith.addf %19, %18 : vector<16x128xf32>
    %21 = arith.mulf %10, %20 : vector<16x128xf32>
    %c0_10 = arith.constant 0 : index
    %c0_11 = arith.constant 0 : index
    %22 = vector.load %arg8[%c0_10, %c0_11] : memref<16x128xf32, #tpu.memory_space<vmem>>, vector<16x128xf32>
    %c0_12 = arith.constant 0 : index
    %c0_13 = arith.constant 0 : index
    %23 = vector.load %arg5[%c0_12, %c0_13] : memref<128x128xf32, #tpu.memory_space<vmem>>, vector<128x128xf32>
    %cst_14 = arith.constant dense<0.000000e+00> : vector<16x128xf32>
    %24 = tpu.matmul %21, %23, %cst_14 {dimension_numbers = #tpu.dot_dimension_numbers<[1], [0], [0], [1], [0, 0, 1, 1], [], []>} : vector<16x128xf32>, vector<128x128xf32>, vector<16x128xf32> -> vector<16x128xf32>
    %25 = arith.addf %22, %24 : vector<16x128xf32>
    %c0_15 = arith.constant 0 : index
    %c0_16 = arith.constant 0 : index
    %26 = vector.load %arg8[%c0_15, %c0_16] : memref<16x128xf32, #tpu.memory_space<vmem>>, vector<16x128xf32>
    tpu.vector_store %arg8[%c0_15, %c0_16], %25 {strides = array<i32>} : memref<16x128xf32, #tpu.memory_space<vmem>>, vector<16x128xf32>,
    %c0_i32_17 = arith.constant 0 : i32
    %27 = arith.cmpi eq, %arg1, %c0_i32_17 : i32
    %28 = arith.extui %27 : i1 to i32
    %c0_i32_18 = arith.constant 0 : i32
    %29 = arith.cmpi ne, %28, %c0_i32_18 : i32
    scf.if %29 {
      %c0_19 = arith.constant 0 : index
      %c0_20 = arith.constant 0 : index
      %30 = vector.load %arg8[%c0_19, %c0_20] : memref<16x128xf32, #tpu.memory_space<vmem>>, vector<16x128xf32>
      %c0_21 = arith.constant 0 : index
      %c0_22 = arith.constant 0 : index
      %31 = vector.load %arg6[%c0_21, %c0_22] : memref<1x128xf32, #tpu.memory_space<vmem>>, vector<1x128xf32>
      %32 = vector.broadcast %31 : vector<1x128xf32> to vector<16x128xf32>
      %33 = arith.addf %30, %32 : vector<16x128xf32>
      %c0_23 = arith.constant 0 : index
      %c0_24 = arith.constant 0 : index
      %34 = vector.load %arg7[%c0_23, %c0_24] : memref<16x128xf32, #tpu.memory_space<vmem>>, vector<16x128xf32>
      tpu.vector_store %arg7[%c0_23, %c0_24], %33 {strides = array<i32>} : memref<16x128xf32, #tpu.memory_space<vmem>>, vector<16x128xf32>,
    } else {
    }
    return
  }
  func.func @transform_0(%arg0: i32, %arg1: i32) -> (i32, i32) {
    %c0_i32 = arith.constant 0 : i32
    %c0_i32_0 = arith.constant 0 : i32
    return %arg0, %c0_i32 : i32, i32
  }
  func.func @transform_1(%arg0: i32, %arg1: i32) -> (i32, i32) {
    %c0_i32 = arith.constant 0 : i32
    %c0_i32_0 = arith.constant 0 : i32
    return %c0_i32, %arg1 : i32, i32
  }
  func.func @transform_2(%arg0: i32, %arg1: i32) -> (i32, i32) {
    %c0_i32 = arith.constant 0 : i32
    %c0_i32_0 = arith.constant 0 : i32
    return %c0_i32, %arg1 : i32, i32
  }
  func.func @transform_3(%arg0: i32, %arg1: i32) -> (i32, i32) {
    %c0_i32 = arith.constant 0 : i32
    %c0_i32_0 = arith.constant 0 : i32
    return %arg1, %c0_i32 : i32, i32
  }
  func.func @transform_4(%arg0: i32, %arg1: i32) -> (i32, i32) {
    %c0_i32 = arith.constant 0 : i32
    %c0_i32_0 = arith.constant 0 : i32
    %c0_i32_1 = arith.constant 0 : i32
    return %c0_i32, %c0_i32_0 : i32, i32
  }
  func.func @transform_5(%arg0: i32, %arg1: i32) -> (i32, i32) {
    %c0_i32 = arith.constant 0 : i32
    %c0_i32_0 = arith.constant 0 : i32
    return %arg0, %c0_i32 : i32, i32
  }
}

</mosaic_0001>

<llo_original>
// kernel: tpu_custom_call.1
$region0: #{tpu_custom_call.1}
  #allocation0 [shape = 'u32[]', space=smem, size = 0x4, offset = 0x4, fixed_abs, tag = 'smem constant byte address 0x4 - core index']
  #allocation1 [shape = 'u32[72,128]{1,0:T(1,128)}', space=vmem, size = 0x9000, scoped, tag = 'internal scratch']
  #allocation2 [shape = 'f32[16,128]{1,0:T(8,128)}', space=vmem, size = 0x2000, scoped, tag = 'scratch operand']
  %s0 = inlined_call_operand.hbm [shape: f32[16,128], index: 0, kind: input, shape index: {}]
  %s1 = inlined_call_operand.hbm [shape: f32[128,128], index: 1, kind: input, shape index: {}]
  %s2 = inlined_call_operand.vmem [shape: f32[1,128], index: 2, kind: input, shape index: {}]
  %s3 = inlined_call_operand.hbm [shape: f32[128,128], index: 3, kind: input, shape index: {}]
  %s4 = inlined_call_operand.vmem [shape: f32[1,128], index: 4, kind: input, shape index: {}]
  %s5 = inlined_call_operand.hbm [shape: f32[16,128], index: 5, kind: output, shape index: {}]
  %s6 = sld [smem:[#allocation0]]
  $region50: #{tpu_custom_call.1} parent=0
    _
  %s8 = ssub.s32 1, %s6
  %s9 = scalar_select 0, %s8, %s6
  $region1: #{tpu_custom_call.1} parent=0
    #allocation3 [shape = 'u8[8192]{0}', space=vmem, size = 0x2000, scoped, tag = 'input window, operand 0, single buffered']
    #allocation4 [shape = 's32[1]{0}', space=sflag, size = 0x4, scoped, tag = 'scoped memory for tpu_custom_call.1']
    #allocation5 [shape = 's32[1]{0}', space=sflag, size = 0x4, scoped, tag = 'scoped memory for tpu_custom_call.1']
    #allocation6 [shape = 'u8[65536]{0}', space=vmem, size = 0x10000, scoped, tag = 'input window, operand 1, single buffered']
    #allocation7 [shape = 's32[1]{0}', space=sflag, size = 0x4, scoped, tag = 'scoped memory for tpu_custom_call.1']
    #allocation8 [shape = 'u8[65536]{0}', space=vmem, size = 0x10000, scoped, tag = 'input window, operand 3, single buffered']
    #allocation9 [shape = 'u8[8192]{0}', space=vmem, size = 0x2000, scoped, tag = 'output window, operand 0, single buffered']
    %10 = vsyncpa [#allocation4], 0
    %11 = vsyncpa [#allocation7], 0
    %12 = vsyncpa [#allocation5], 0
    // Predicated region
    $region2: #{tpu_custom_call.1} parent=1 // pred_check
      _
    $region3: #{tpu_custom_call.1} parent=1 // pred_check_branch
      %14 = sbr.rel (0) target = $region5
    $region4: #{tpu_custom_call.1} parent=1 // pred_region
      %16 = vsyncadd [#allocation4], 0
      %s17 = sshll.u32 %s0, 4
      %s18 = int_to_ptr.hbm [resolvable:$true] %s17
      %s19 = sshll.u32 [#allocation3], 4
      %s20 = int_to_ptr.vmem [resolvable:$true] %s19
      %25 = dma.hbm_to_vmem [thread:$0]  %s18, 256, %s20, [#allocation4], 128, 128, 8
    $region5: #{tpu_custom_call.1} parent=1 // pred_fallthru
      _
    // Predicated region
    $region6: #{tpu_custom_call.1} parent=1 // pred_check
      _
    $region7: #{tpu_custom_call.1} parent=1 // pred_check_branch
      %27 = sbr.rel (0) target = $region9
    $region8: #{tpu_custom_call.1} parent=1 // pred_region
      %29 = vsyncadd [#allocation7], 0
      %s30 = sshll.u32 %s1, 4
      %s31 = int_to_ptr.hbm [resolvable:$true] %s30
      %s32 = sshll.u32 [#allocation6], 4
      %s33 = int_to_ptr.vmem [resolvable:$true] %s32
      %38 = dma.hbm_to_vmem [thread:$0]  %s31, 2048, %s33, [#allocation7], 128, 128, 8
    $region9: #{tpu_custom_call.1} parent=1 // pred_fallthru
      _
    // Predicated region
    $region10: #{tpu_custom_call.1} parent=1 // pred_check
      _
    $region11: #{tpu_custom_call.1} parent=1 // pred_check_branch
      %40 = sbr.rel (0) target = $region13
    $region12: #{tpu_custom_call.1} parent=1 // pred_region
      _
    $region13: #{tpu_custom_call.1} parent=1 // pred_fallthru
      _
    // Predicated region
    $region14: #{tpu_custom_call.1} parent=1 // pred_check
      _
    $region15: #{tpu_custom_call.1} parent=1 // pred_check_branch
      %42 = sbr.rel (0) target = $region17
    $region16: #{tpu_custom_call.1} parent=1 // pred_region
      %44 = vsyncadd [#allocation7], 0
      %s45 = sshll.u32 %s3, 4
      %s46 = int_to_ptr.hbm [resolvable:$true] %s45
      %s47 = sshll.u32 [#allocation8], 4
      %s48 = int_to_ptr.vmem [resolvable:$true] %s47
      %53 = dma.hbm_to_vmem [thread:$0]  %s46, 2048, %s48, [#allocation7], 128, 128, 8
    $region17: #{tpu_custom_call.1} parent=1 // pred_fallthru
      _
    // Predicated region
    $region18: #{tpu_custom_call.1} parent=1 // pred_check
      _
    $region19: #{tpu_custom_call.1} parent=1 // pred_check_branch
      %55 = sbr.rel (0) target = $region21
    $region20: #{tpu_custom_call.1} parent=1 // pred_region
      _
    $region21: #{tpu_custom_call.1} parent=1 // pred_fallthru
      _
    // Predicated region
    $region22: #{tpu_custom_call.1} parent=1 // pred_check
      _
    $region23: #{tpu_custom_call.1} parent=1 // pred_check_branch
      %57 = sbr.rel (0) target = $region25
    $region24: #{tpu_custom_call.1} parent=1 // pred_region
      %59 = dma.done [#allocation4], 256
    $region25: #{tpu_custom_call.1} parent=1 // pred_fallthru
      _
    // Predicated region
    $region26: #{tpu_custom_call.1} parent=1 // pred_check
      _
    $region27: #{tpu_custom_call.1} parent=1 // pred_check_branch
      %61 = sbr.rel (0) target = $region29
    $region28: #{tpu_custom_call.1} parent=1 // pred_region
      %63 = dma.done [#allocation7], 2048
    $region29: #{tpu_custom_call.1} parent=1 // pred_fallthru
      _
    // Predicated region
    $region30: #{tpu_custom_call.1} parent=1 // pred_check
      _
    $region31: #{tpu_custom_call.1} parent=1 // pred_check_branch
      %65 = sbr.rel (0) target = $region33
    $region32: #{tpu_custom_call.1} parent=1 // pred_region
      %67 = dma.done [#allocation7], 2048
    $region33: #{tpu_custom_call.1} parent=1 // pred_fallthru
      _
    %p68 = scmp.eq.s32.totalorder 0, 0
    // Predicated region
    $region34: #{tpu_custom_call.1} parent=1 // pred_check
      %p69 = pneg %p68
    $region35: #{tpu_custom_call.1} parent=1 // pred_check_branch
      %71 = sbr.rel (%p69) target = $region37
    $region36: #{tpu_custom_call.1} parent=1 // pred_region
      %72 = vst [vmem:[#allocation2] sm:$0xff] 0.0
      %73 = vst [vmem:[#allocation2 + $0x8] sm:$0xff] 0.0
    $region37: #{tpu_custom_call.1} parent=1 // pred_fallthru
      _
    %v74 = vld [vmem:[#allocation3] sm:$0xff]
    %v75 = vld [vmem:[#allocation3 + $0x8] sm:$0xff]
    %v76 = vld [vmem:[#allocation6] sm:$0xff]
    %v77 = vld [vmem:[#allocation6 + $0x8] sm:$0xff]
    %v78 = vld [vmem:[#allocation6 + $0x10] sm:$0xff]
    %v79 = vld [vmem:[#allocation6 + $0x18] sm:$0xff]
    %v80 = vld [vmem:[#allocation6 + $0x20] sm:$0xff]
    %v81 = vld [vmem:[#allocation6 + $0x28] sm:$0xff]
    %v82 = vld [vmem:[#allocation6 + $0x30] sm:$0xff]
    %v83 = vld [vmem:[#allocation6 + $0x38] sm:$0xff]
    %v84 = vld [vmem:[#allocation6 + $0x40] sm:$0xff]
    %v85 = vld [vmem:[#allocation6 + $0x48] sm:$0xff]
    %v86 = vld [vmem:[#allocation6 + $0x50] sm:$0xff]
    %v87 = vld [vmem:[#allocation6 + $0x58] sm:$0xff]
    %v88 = vld [vmem:[#allocation6 + $0x60] sm:$0xff]
    %v89 = vld [vmem:[#allocation6 + $0x68] sm:$0xff]
    %v90 = vld [vmem:[#allocation6 + $0x70] sm:$0xff]
    %v91 = vld [vmem:[#allocation6 + $0x78] sm:$0xff]
    %v92 = vld [vmem:[%s2] sm:$0x1]
    %v94 = vperm.slane %v92, 0
    %96 = vmatpush.msra.mxu0 %v91
    %97 = vmatpush.msra.mxu0 %v90
    %98 = vmatpush.msra.mxu0 %v89
    %99 = vmatpush.msra.mxu0 %v88
    %100 = vmatpush.msra.mxu0 %v87
    %101 = vmatpush.msra.mxu0 %v86
    %102 = vmatpush.msra.mxu0 %v85
    %103 = vmatpush.msra.mxu0 %v84
    %104 = vmatpush.msra.mxu0 %v83
    %105 = vmatpush.msra.mxu0 %v82
    %106 = vmatpush.msra.mxu0 %v81
    %107 = vmatpush.msra.mxu0 %v80
    %108 = vmatpush.msra.mxu0 %v79
    %109 = vmatpush.msra.mxu0 %v78
    %110 = vmatpush.msra.mxu0 %v77
    %111 = vmatpush.msra.mxu0 %v76
    %112 = vmatmul.f32.gmra.mxu0 %v74
    %v113 = vpop.f32.mrf.mxu0
    %v114 = vadd.f32 %v94, %v113
    %115 = vmatmul.f32.gmra.mxu0 %v75
    %v116 = vpop.f32.mrf.mxu0
    %v117 = vadd.f32 %v94, %v116
    %118 = vdwg.mxu0
    %v119 = vmul.f32 %v114, 0.5
    %v120 = vmul.f32 %v117, 0.5
    %v121 = vmul.f32 %v114, 0.044715
    %v122 = vmul.f32 %v117, 0.044715
    %v123 = vmul.f32 %v121, %v114
    %v124 = vmul.f32 %v122, %v117
    %v125 = vmul.f32 %v123, %v114
    %v126 = vmul.f32 %v124, %v117
    %v127 = vadd.f32 %v114, %v125
    %v128 = vadd.f32 %v117, %v126
    %v129 = vmul.f32 %v127, 0.7978846
    %v130 = vmul.f32 %v128, 0.7978846
    %v131 = vtanh.pop %v129
    %v132 = vtanh.pop %v130
    %v133 = vadd.f32 %v131, 1.0
    %v134 = vadd.f32 %v132, 1.0
    %v135 = vmul.f32 %v119, %v133
    %v136 = vmul.f32 %v120, %v134
    %v137 = vld [vmem:[#allocation2] sm:$0xff]
    %v138 = vld [vmem:[#allocation2 + $0x8] sm:$0xff]
    %v139 = vld [vmem:[#allocation8] sm:$0xff]
    %v140 = vld [vmem:[#allocation8 + $0x8] sm:$0xff]
    %v141 = vld [vmem:[#allocation8 + $0x10] sm:$0xff]
    %v142 = vld [vmem:[#allocation8 + $0x18] sm:$0xff]
    %v143 = vld [vmem:[#allocation8 + $0x20] sm:$0xff]
    %v144 = vld [vmem:[#allocation8 + $0x28] sm:$0xff]
    %v145 = vld [vmem:[#allocation8 + $0x30] sm:$0xff]
    %v146 = vld [vmem:[#allocation8 + $0x38] sm:$0xff]
    %v147 = vld [vmem:[#allocation8 + $0x40] sm:$0xff]
    %v148 = vld [vmem:[#allocation8 + $0x48] sm:$0xff]
    %v149 = vld [vmem:[#allocation8 + $0x50] sm:$0xff]
    %v150 = vld [vmem:[#allocation8 + $0x58] sm:$0xff]
    %v151 = vld [vmem:[#allocation8 + $0x60] sm:$0xff]
    %v152 = vld [vmem:[#allocation8 + $0x68] sm:$0xff]
    %v153 = vld [vmem:[#allocation8 + $0x70] sm:$0xff]
    %v154 = vld [vmem:[#allocation8 + $0x78] sm:$0xff]
    %155 = vmatpush.msra.mxu0 %v154
    %156 = vmatpush.msra.mxu0 %v153
    %157 = vmatpush.msra.mxu0 %v152
    %158 = vmatpush.msra.mxu0 %v151
    %159 = vmatpush.msra.mxu0 %v150
    %160 = vmatpush.msra.mxu0 %v149
    %161 = vmatpush.msra.mxu0 %v148
    %162 = vmatpush.msra.mxu0 %v147
    %163 = vmatpush.msra.mxu0 %v146
    %164 = vmatpush.msra.mxu0 %v145
    %165 = vmatpush.msra.mxu0 %v144
    %166 = vmatpush.msra.mxu0 %v143
    %167 = vmatpush.msra.mxu0 %v142
    %168 = vmatpush.msra.mxu0 %v141
    %169 = vmatpush.msra.mxu0 %v140
    %170 = vmatpush.msra.mxu0 %v139
    %171 = vmatmul.f32.gmra.mxu0 %v135
    %v172 = vpop.f32.mrf.mxu0
    %v173 = vadd.f32 0.0, %v172
    %174 = vmatmul.f32.gmra.mxu0 %v136
    %v175 = vpop.f32.mrf.mxu0
    %v176 = vadd.f32 0.0, %v175
    %177 = vdwg.mxu0
    %v178 = vadd.f32 %v137, %v173
    %v179 = vadd.f32 %v138, %v176
    %180 = vst [vmem:[#allocation2] sm:$0xff] %v178
    %181 = vst [vmem:[#allocation2 + $0x8] sm:$0xff] %v179
    // Predicated region
    $region38: #{tpu_custom_call.1} parent=1 // pred_check
      %p182 = pneg %p68
    $region39: #{tpu_custom_call.1} parent=1 // pred_check_branch
      %184 = sbr.rel (%p182) target = $region41
    $region40: #{tpu_custom_call.1} parent=1 // pred_region
      %v185 = vld [vmem:[#allocation2] sm:$0xff]
      %v186 = vld [vmem:[#allocation2 + $0x8] sm:$0xff]
      %v187 = vld [vmem:[%s4] sm:$0x1]
      %v189 = vperm.slane %v187, 0
      %v191 = vadd.f32 %v185, %v189
      %v192 = vadd.f32 %v186, %v189
      %193 = vst [vmem:[#allocation9] sm:$0xff] %v191
      %194 = vst [vmem:[#allocation9 + $0x8] sm:$0xff] %v192
    $region41: #{tpu_custom_call.1} parent=1 // pred_fallthru
      _
    // Predicated region
    $region42: #{tpu_custom_call.1} parent=1 // pred_check
      _
    $region43: #{tpu_custom_call.1} parent=1 // pred_check_branch
      %196 = sbr.rel (0) target = $region45
    $region44: #{tpu_custom_call.1} parent=1 // pred_region
      %198 = vsyncadd [#allocation5], 0
      %s199 = sshll.u32 [#allocation9], 4
      %s200 = int_to_ptr.vmem [resolvable:$true] %s199
      %s201 = sshll.u32 %s5, 4
      %s202 = int_to_ptr.hbm [resolvable:$true] %s201
      %207 = dma.vmem_to_hbm [thread:$0]  %s200, 256, %s202, [#allocation5], 128, 128, 8
    $region45: #{tpu_custom_call.1} parent=1 // pred_fallthru
      _
    // Predicated region
    $region46: #{tpu_custom_call.1} parent=1 // pred_check
      _
    $region47: #{tpu_custom_call.1} parent=1 // pred_check_branch
      %209 = sbr.rel (0) target = $region49
    $region48: #{tpu_custom_call.1} parent=1 // pred_region
      %211 = dma.done [#allocation5], 256
    $region49: #{tpu_custom_call.1} parent=1 // pred_fallthru
      _
    %212 = vsyncpa [#allocation4], 1
    %213 = vsyncpa [#allocation7], 1
    %214 = vsyncpa [#allocation5], 1

</llo_original>
